<compile_context>
chip_gen: v6e
topology: v6e:2x2x1
jax: 0.10.0
libtpu: 0.0.40
codegen_flags: <defaults>
</compile_context>

<pallas_src>
import jax
import jax.numpy as jnp
from jax.experimental import pallas as pl
from jax.experimental.pallas import tpu as pltpu

# ----------------------------- configuration --------------------------------
N_BATCH = 2
DATASET_MAX_LENGTH = 7
MAX_LEN = DATASET_MAX_LENGTH + 1      # self.max_length = dataset_max_length + 1
D_MODEL = 32                          # toy stand-in for d_model=512
NUM_CLASSES = 10
CLS_PAD = 128                         # lane-dense padded class dimension
NULL_LABEL = 0
LOSS_WEIGHT = 1.0

# Row-tile target.  256 is a multiple of 128 (v5e MXU) and 256 (v6e MXU) and,
# even at d_model=512 in bf16 with 2-deep buffering, stays far inside v7x's
# 64 MiB VMEM and v5e's 16 MiB default scoped limit.
# TODO(synk): at d_model=512 / large N*T, sweep TILE_R up to 2048 (bf16) and
# set vmem_limit_bytes if the default scoped VMEM is exceeded.
TILE_R_TARGET = 256


# ------------------------------- Pallas kernel ------------------------------
def _alignment_kernel(l_ref, v_ref, wl_ref, wv_ref, ba_ref, wc_ref, bc_ref,
                      logit_ref):
    f32 = jnp.float32
    l = l_ref[...]                                        # (TILE_R, E) bf16
    v = v_ref[...]                                        # (TILE_R, E) bf16

    # f_att = sigmoid(cat(l, v) @ W_att^T + b_att), with the weight split into
    # halves so the (R, 2E) concat never exists.  bf16 operands, f32 accum.
    z = (jnp.dot(l, wl_ref[...], preferred_element_type=f32)
         + jnp.dot(v, wv_ref[...], preferred_element_type=f32)
         + ba_ref[...])                                   # (TILE_R, E) f32
    # sigmoid via EUP exp + approx reciprocal (both off the VALU slots).
    f_att = pl.reciprocal(1.0 + jnp.exp(-z), approx=True)

    # gated fusion: l + f_att * (v - l)  (one fewer VPU mul than the naive form)
    lf = l.astype(f32)
    out = lf + f_att * (v.astype(f32) - lf)               # (TILE_R, E) f32

    # classification head; class dim zero-padded to 128 lanes -> unmasked vst.
    logit_ref[...] = (jnp.dot(out.astype(jnp.bfloat16), wc_ref[...],
                              preferred_element_type=f32)
                      + bc_ref[...])                      # (TILE_R, CLS_PAD)


def _choose_tile_r(r):
    """Row tile: target 256, shrunk to a multiple of 8 for tiny inputs."""
    if r >= TILE_R_TARGET:
        return TILE_R_TARGET
    return max(((r + 7) // 8) * 8, 8)


def _run_alignment_kernel(l2, v2, wl, wv, ba, wc, bc):
    r, e = l2.shape
    cls_pad = wc.shape[1]

    tile_r = _choose_tile_r(r)
    n_tiles = pl.cdiv(r, tile_r)
    r_pad = n_tiles * tile_r
    if r_pad != r:
        pad = ((0, r_pad - r), (0, 0))
        l2 = jnp.pad(l2, pad)
        v2 = jnp.pad(v2, pad)

    row_spec = pl.BlockSpec((tile_r, e), lambda i: (i, 0))
    const = lambda shape: pl.BlockSpec(shape, lambda i: (0, 0))  # resident

    logits_pad = pl.pallas_call(
        _alignment_kernel,
        out_shape=jax.ShapeDtypeStruct((r_pad, cls_pad), jnp.float32),
        grid=(n_tiles,),
        in_specs=[
            row_spec,                        # l rows
            row_spec,                        # v rows
            const((e, e)),                   # wl   (resident)
            const((e, e)),                   # wv   (resident)
            const((1, e)),                   # ba   (resident)
            const((e, cls_pad)),             # wc   (resident)
            const((1, cls_pad)),             # bc   (resident)
        ],
        out_specs=pl.BlockSpec((tile_r, cls_pad), lambda i: (i, 0)),
        compiler_params=pltpu.CompilerParams(
            dimension_semantics=("parallel",)),
    )(l2, v2, wl, wv, ba, wc, bc)

    return logits_pad[:r]


# ------------------------------ plain-JAX glue -------------------------------
def _get_length(logits, null_label):
    """Greedy decoder length, matching BaseModel._get_length (dim=-1)."""
    # TODO(synk): tiny scalar decode kept in plain JAX glue (control logic).
    out = jnp.argmax(logits, axis=-1) == null_label            # (N, T) bool
    abn = jnp.any(out, axis=-1)                                # (N,)
    cum = jnp.cumsum(out.astype(jnp.int32), axis=-1)
    first = jnp.argmax(((cum == 1) & out).astype(jnp.int32), axis=-1)
    lengths = first + 1
    lengths = jnp.where(abn, lengths,
                        jnp.full_like(lengths, logits.shape[1]))
    return lengths.astype(jnp.int32)


def init_params(key):
    k = jax.random.split(key, 5)
    # nn.Linear(2*d_model, d_model): weight (E, 2E) split into two (E, E)
    # halves, each stored pre-transposed (in, out) and in bf16 for the MXU.
    wl = (jax.random.normal(k[0], (D_MODEL, D_MODEL), jnp.float32) * 0.05
          ).astype(jnp.bfloat16)
    wv = (jax.random.normal(k[1], (D_MODEL, D_MODEL), jnp.float32) * 0.05
          ).astype(jnp.bfloat16)
    ba = jax.random.normal(k[2], (1, D_MODEL), jnp.float32) * 0.01   # f32 bias
    # nn.Linear(d_model, num_classes): pre-transposed (E, CLS), bf16, and
    # zero-padded on the class axis to CLS_PAD for lane-dense output stores.
    wc = jax.random.normal(k[3], (D_MODEL, NUM_CLASSES), jnp.float32) * 0.1
    bc = jax.random.normal(k[4], (1, NUM_CLASSES), jnp.float32) * 0.01
    wc_pad = (jnp.zeros((D_MODEL, CLS_PAD), jnp.float32)
              .at[:, :NUM_CLASSES].set(wc)).astype(jnp.bfloat16)
    bc_pad = jnp.zeros((1, CLS_PAD), jnp.float32).at[:, :NUM_CLASSES].set(bc)
    return {"wl": wl, "wv": wv, "ba": ba, "wc": wc_pad, "bc": bc_pad}


def base_alignment_forward(l_feature, v_feature, params):
    n, t, e = l_feature.shape
    # Fold (N, T) into rows; keep activations bf16 end-to-end (halves HBM read
    # traffic and matches the MXU's native operand dtype).
    l2 = l_feature.reshape(n * t, e).astype(jnp.bfloat16)
    v2 = v_feature.reshape(n * t, e).astype(jnp.bfloat16)

    logits_pad = _run_alignment_kernel(
        l2, v2, params["wl"], params["wv"], params["ba"],
        params["wc"], params["bc"])                        # (N*T, CLS_PAD)

    logits = logits_pad[:, :NUM_CLASSES].reshape(n, t, NUM_CLASSES)
    pt_lengths = _get_length(logits, NULL_LABEL)

    return {
        "logits": logits,              # (N, T, num_classes)
        "pt_lengths": pt_lengths,      # (N,) int32
        "loss_weight": LOSS_WEIGHT,
        "name": "alignment",
    }


def _reference_forward(l_feature, v_feature, params):
    """Pure-JAX reference mirroring the kernel's bf16 operand rounding."""
    f32 = jnp.float32
    l = l_feature.astype(jnp.bfloat16).astype(f32)
    v = v_feature.astype(jnp.bfloat16).astype(f32)
    wl = params["wl"].astype(f32)
    wv = params["wv"].astype(f32)
    z = l @ wl + v @ wv + params["ba"][0]
    f_att = 1.0 / (1.0 + jnp.exp(-z))
    out = l + f_att * (v - l)
    wc = params["wc"].astype(f32)[:, :NUM_CLASSES]
    logits = (out.astype(jnp.bfloat16).astype(f32) @ wc
              + params["bc"][0, :NUM_CLASSES])
    return logits


# ---------------------------------- main -------------------------------------
if __name__ == "__main__":
    key = jax.random.PRNGKey(0)
    k_l, k_v, k_par = jax.random.split(key, 3)
    l_feature = jax.random.normal(k_l, (N_BATCH, MAX_LEN, D_MODEL), jnp.float32)
    v_feature = jax.random.normal(k_v, (N_BATCH, MAX_LEN, D_MODEL), jnp.float32)
    params = init_params(k_par)

    out = base_alignment_forward(l_feature, v_feature, params)
    jax.block_until_ready(out["logits"])
    jax.block_until_ready(out["pt_lengths"])

    assert out["logits"].shape == (N_BATCH, MAX_LEN, NUM_CLASSES)
    assert out["pt_lengths"].shape == (N_BATCH,)
    assert out["name"] == "alignment"

    ref_logits = _reference_forward(l_feature, v_feature, params)
    err = float(jnp.max(jnp.abs(out["logits"] - ref_logits)))
    # Tolerance loosened for bf16 matmul operands + approx-reciprocal sigmoid.
    assert err < 2e-2, f"max abs error vs reference: {err}"

    print("KERNEL_OK")
</pallas_src>

<mosaic_0001>
module attributes {stable_mosaic.version = 11 : i64} {
  func.func @_alignment_kernel(%arg0: i32, %arg1: memref<16x32xbf16, #tpu.memory_space<vmem>>, %arg2: memref<16x32xbf16, #tpu.memory_space<vmem>>, %arg3: memref<32x32xbf16, #tpu.memory_space<vmem>>, %arg4: memref<32x32xbf16, #tpu.memory_space<vmem>>, %arg5: memref<1x32xf32, #tpu.memory_space<vmem>>, %arg6: memref<32x128xbf16, #tpu.memory_space<vmem>>, %arg7: memref<1x128xf32, #tpu.memory_space<vmem>>, %arg8: memref<16x128xf32, #tpu.memory_space<vmem>>) attributes {dimension_semantics = [#tpu.dimension_semantics<parallel>], iteration_bounds = array<i64: 1>, scalar_prefetch = 0 : i64, scratch_operands = 0 : i64, tpu.core_type = #tpu.core_type<tc>, window_params = [{transform_indices = @transform_0, window_bounds = array<i64: 16, 32>}, {transform_indices = @transform_1, window_bounds = array<i64: 16, 32>}, {pipeline_mode = #tpu.pipeline_mode<synchronous>, transform_indices = @transform_2, window_bounds = array<i64: 32, 32>}, {pipeline_mode = #tpu.pipeline_mode<synchronous>, transform_indices = @transform_3, window_bounds = array<i64: 32, 32>}, {pipeline_mode = #tpu.pipeline_mode<synchronous>, transform_indices = @transform_4, window_bounds = array<i64: 1, 32>}, {pipeline_mode = #tpu.pipeline_mode<synchronous>, transform_indices = @transform_5, window_bounds = array<i64: 32, 128>}, {pipeline_mode = #tpu.pipeline_mode<synchronous>, transform_indices = @transform_6, window_bounds = array<i64: 1, 128>}, {transform_indices = @transform_7, window_bounds = array<i64: 16, 128>}]} {
    %c0 = arith.constant 0 : index
    %c0_0 = arith.constant 0 : index
    %0 = vector.load %arg1[%c0, %c0_0] : memref<16x32xbf16, #tpu.memory_space<vmem>>, vector<16x32xbf16>
    %c0_1 = arith.constant 0 : index
    %c0_2 = arith.constant 0 : index
    %1 = vector.load %arg2[%c0_1, %c0_2] : memref<16x32xbf16, #tpu.memory_space<vmem>>, vector<16x32xbf16>
    %c0_3 = arith.constant 0 : index
    %c0_4 = arith.constant 0 : index
    %2 = vector.load %arg3[%c0_3, %c0_4] : memref<32x32xbf16, #tpu.memory_space<vmem>>, vector<32x32xbf16>
    %cst = arith.constant dense<0.000000e+00> : vector<16x32xf32>
    %3 = tpu.matmul %0, %2, %cst {dimension_numbers = #tpu.dot_dimension_numbers<[1], [0], [0], [1], [0, 0, 1, 1], [], []>} : vector<16x32xbf16>, vector<32x32xbf16>, vector<16x32xf32> -> vector<16x32xf32>
    %c0_5 = arith.constant 0 : index
    %c0_6 = arith.constant 0 : index
    %4 = vector.load %arg4[%c0_5, %c0_6] : memref<32x32xbf16, #tpu.memory_space<vmem>>, vector<32x32xbf16>
    %cst_7 = arith.constant dense<0.000000e+00> : vector<16x32xf32>
    %5 = tpu.matmul %1, %4, %cst_7 {dimension_numbers = #tpu.dot_dimension_numbers<[1], [0], [0], [1], [0, 0, 1, 1], [], []>} : vector<16x32xbf16>, vector<32x32xbf16>, vector<16x32xf32> -> vector<16x32xf32>
    %6 = arith.addf %3, %5 : vector<16x32xf32>
    %c0_8 = arith.constant 0 : index
    %c0_9 = arith.constant 0 : index
    %7 = vector.load %arg5[%c0_8, %c0_9] : memref<1x32xf32, #tpu.memory_space<vmem>>, vector<1x32xf32>
    %8 = vector.broadcast %7 : vector<1x32xf32> to vector<16x32xf32>
    %9 = arith.addf %6, %8 : vector<16x32xf32>
    %cst_10 = arith.constant 0.000000e+00 : f32
    %10 = vector.broadcast %cst_10 : f32 to vector<16x32xf32>
    %11 = arith.subf %10, %9 : vector<16x32xf32>
    %12 = math.exp %11 : vector<16x32xf32>
    %cst_11 = arith.constant 1.000000e+00 : f32
    %13 = vector.broadcast %cst_11 : f32 to vector<16x32xf32>
    %14 = arith.addf %13, %12 : vector<16x32xf32>
    %15 = tpu.reciprocal %14 {approx = true} : vector<16x32xf32> -> vector<16x32xf32>
    %16 = arith.extf %0 : vector<16x32xbf16> to vector<16x32xf32>
    %17 = arith.extf %1 : vector<16x32xbf16> to vector<16x32xf32>
    %18 = arith.subf %17, %16 : vector<16x32xf32>
    %19 = arith.mulf %15, %18 : vector<16x32xf32>
    %20 = arith.addf %16, %19 : vector<16x32xf32>
    %21 = arith.truncf %20 : vector<16x32xf32> to vector<16x32xbf16>
    %c0_12 = arith.constant 0 : index
    %c0_13 = arith.constant 0 : index
    %22 = vector.load %arg6[%c0_12, %c0_13] : memref<32x128xbf16, #tpu.memory_space<vmem>>, vector<32x128xbf16>
    %cst_14 = arith.constant dense<0.000000e+00> : vector<16x128xf32>
    %23 = tpu.matmul %21, %22, %cst_14 {dimension_numbers = #tpu.dot_dimension_numbers<[1], [0], [0], [1], [0, 0, 1, 1], [], []>} : vector<16x32xbf16>, vector<32x128xbf16>, vector<16x128xf32> -> vector<16x128xf32>
    %c0_15 = arith.constant 0 : index
    %c0_16 = arith.constant 0 : index
    %24 = vector.load %arg7[%c0_15, %c0_16] : memref<1x128xf32, #tpu.memory_space<vmem>>, vector<1x128xf32>
    %25 = vector.broadcast %24 : vector<1x128xf32> to vector<16x128xf32>
    %26 = arith.addf %23, %25 : vector<16x128xf32>
    %c0_17 = arith.constant 0 : index
    %c0_18 = arith.constant 0 : index
    %27 = vector.load %arg8[%c0_17, %c0_18] : memref<16x128xf32, #tpu.memory_space<vmem>>, vector<16x128xf32>
    tpu.vector_store %arg8[%c0_17, %c0_18], %26 {strides = array<i32>} : memref<16x128xf32, #tpu.memory_space<vmem>>, vector<16x128xf32>,
    return
  }
  func.func @transform_0(%arg0: i32) -> (i32, i32) {
    %c0_i32 = arith.constant 0 : i32
    %c0_i32_0 = arith.constant 0 : i32
    return %arg0, %c0_i32 : i32, i32
  }
  func.func @transform_1(%arg0: i32) -> (i32, i32) {
    %c0_i32 = arith.constant 0 : i32
    %c0_i32_0 = arith.constant 0 : i32
    return %arg0, %c0_i32 : i32, i32
  }
  func.func @transform_2(%arg0: i32) -> (i32, i32) {
    %c0_i32 = arith.constant 0 : i32
    %c0_i32_0 = arith.constant 0 : i32
    %c0_i32_1 = arith.constant 0 : i32
    return %c0_i32, %c0_i32_0 : i32, i32
  }
  func.func @transform_3(%arg0: i32) -> (i32, i32) {
    %c0_i32 = arith.constant 0 : i32
    %c0_i32_0 = arith.constant 0 : i32
    %c0_i32_1 = arith.constant 0 : i32
    return %c0_i32, %c0_i32_0 : i32, i32
  }
  func.func @transform_4(%arg0: i32) -> (i32, i32) {
    %c0_i32 = arith.constant 0 : i32
    %c0_i32_0 = arith.constant 0 : i32
    %c0_i32_1 = arith.constant 0 : i32
    return %c0_i32, %c0_i32_0 : i32, i32
  }
  func.func @transform_5(%arg0: i32) -> (i32, i32) {
    %c0_i32 = arith.constant 0 : i32
    %c0_i32_0 = arith.constant 0 : i32
    %c0_i32_1 = arith.constant 0 : i32
    return %c0_i32, %c0_i32_0 : i32, i32
  }
  func.func @transform_6(%arg0: i32) -> (i32, i32) {
    %c0_i32 = arith.constant 0 : i32
    %c0_i32_0 = arith.constant 0 : i32
    %c0_i32_1 = arith.constant 0 : i32
    return %c0_i32, %c0_i32_0 : i32, i32
  }
  func.func @transform_7(%arg0: i32) -> (i32, i32) {
    %c0_i32 = arith.constant 0 : i32
    %c0_i32_0 = arith.constant 0 : i32
    return %arg0, %c0_i32 : i32, i32
  }
}

</mosaic_0001>

<llo_original>
// kernel: tpu_custom_call.1
$region0: #{tpu_custom_call.1}
  #allocation0 [shape = 'u32[]', space=smem, size = 0x4, offset = 0x4, fixed_abs, tag = 'smem constant byte address 0x4 - core index']
  #allocation1 [shape = 'u32[144,128]{1,0:T(1,128)}', space=vmem, size = 0x12000, scoped, tag = 'internal scratch']
  %s0 = inlined_call_operand.hbm [shape: bf16[16,32], index: 0, kind: input, shape index: {}]
  %s1 = inlined_call_operand.hbm [shape: bf16[16,32], index: 1, kind: input, shape index: {}]
  %s2 = inlined_call_operand.hbm [shape: bf16[32,32], index: 2, kind: input, shape index: {}]
  %s3 = inlined_call_operand.hbm [shape: bf16[32,32], index: 3, kind: input, shape index: {}]
  %s4 = inlined_call_operand.vmem [shape: f32[1,32], index: 4, kind: input, shape index: {}]
  %s5 = inlined_call_operand.hbm [shape: bf16[32,128], index: 5, kind: input, shape index: {}]
  %s6 = inlined_call_operand.vmem [shape: f32[1,128], index: 6, kind: input, shape index: {}]
  %s7 = inlined_call_operand.hbm [shape: f32[16,128], index: 7, kind: output, shape index: {}]
  %s8 = sld [smem:[#allocation0]]
  $region58: #{tpu_custom_call.1} parent=0
    _
  %s10 = ssub.s32 1, %s8
  %s11 = scalar_select 0, %s10, %s8
  $region1: #{tpu_custom_call.1} parent=0
    #allocation2 [shape = 'u8[4096]{0}', space=vmem, size = 0x1000, scoped, tag = 'input window, operand 0, single buffered']
    #allocation3 [shape = 's32[1]{0}', space=sflag, size = 0x4, scoped, tag = 'scoped memory for tpu_custom_call.1']
    #allocation4 [shape = 's32[1]{0}', space=sflag, size = 0x4, scoped, tag = 'scoped memory for tpu_custom_call.1']
    #allocation5 [shape = 'u8[4096]{0}', space=vmem, size = 0x1000, scoped, tag = 'input window, operand 1, single buffered']
    #allocation6 [shape = 's32[1]{0}', space=sflag, size = 0x4, scoped, tag = 'scoped memory for tpu_custom_call.1']
    #allocation7 [shape = 'u8[8192]{0}', space=vmem, size = 0x2000, scoped, tag = 'input window, operand 2, single buffered']
    #allocation8 [shape = 'u8[8192]{0}', space=vmem, size = 0x2000, scoped, tag = 'input window, operand 3, single buffered']
    #allocation9 [shape = 's32[1]{0}', space=sflag, size = 0x4, scoped, tag = 'scoped memory for tpu_custom_call.1']
    #allocation10 [shape = 'u8[8192]{0}', space=vmem, size = 0x2000, scoped, tag = 'input window, operand 5, single buffered']
    #allocation11 [shape = 'u8[8192]{0}', space=vmem, size = 0x2000, scoped, tag = 'output window, operand 0, single buffered']
    %12 = vsyncpa [#allocation3], 0
    %13 = vsyncpa [#allocation6], 0
    %14 = vsyncpa [#allocation9], 0
    %15 = vsyncpa [#allocation4], 0
    // Predicated region
    $region2: #{tpu_custom_call.1} parent=1 // pred_check
      _
    $region3: #{tpu_custom_call.1} parent=1 // pred_check_branch
      %17 = sbr.rel (0) target = $region5
    $region4: #{tpu_custom_call.1} parent=1 // pred_region
      %s19 = ssub.s32 128, 128
      %20 = vsyncadd [#allocation3], %s19
      %s21 = sshll.u32 [#allocation2], 4
      %s22 = int_to_ptr.vmem [resolvable:$true] %s21
      %27 = dma.hbm_to_vmem [thread:$0]  %s0, 128, %s22, [#allocation3], 64, 64, 4
    $region5: #{tpu_custom_call.1} parent=1 // pred_fallthru
      _
    // Predicated region
    $region6: #{tpu_custom_call.1} parent=1 // pred_check
      _
    $region7: #{tpu_custom_call.1} parent=1 // pred_check_branch
      %29 = sbr.rel (0) target = $region9
    $region8: #{tpu_custom_call.1} parent=1 // pred_region
      %s31 = ssub.s32 128, 128
      %32 = vsyncadd [#allocation6], %s31
      %s33 = sshll.u32 [#allocation5], 4
      %s34 = int_to_ptr.vmem [resolvable:$true] %s33
      %39 = dma.hbm_to_vmem [thread:$0]  %s1, 128, %s34, [#allocation6], 64, 64, 4
    $region9: #{tpu_custom_call.1} parent=1 // pred_fallthru
      _
    // Predicated region
    $region10: #{tpu_custom_call.1} parent=1 // pred_check
      _
    $region11: #{tpu_custom_call.1} parent=1 // pred_check_branch
      %41 = sbr.rel (0) target = $region13
    $region12: #{tpu_custom_call.1} parent=1 // pred_region
      %s43 = ssub.s32 256, 256
      %44 = vsyncadd [#allocation6], %s43
      %s45 = sshll.u32 [#allocation7], 4
      %s46 = int_to_ptr.vmem [resolvable:$true] %s45
      %51 = dma.hbm_to_vmem [thread:$0]  %s2, 256, %s46, [#allocation6], 64, 64, 4
    $region13: #{tpu_custom_call.1} parent=1 // pred_fallthru
      _
    // Predicated region
    $region14: #{tpu_custom_call.1} parent=1 // pred_check
      _
    $region15: #{tpu_custom_call.1} parent=1 // pred_check_branch
      %53 = sbr.rel (0) target = $region17
    $region16: #{tpu_custom_call.1} parent=1 // pred_region
      %s55 = ssub.s32 256, 256
      %56 = vsyncadd [#allocation9], %s55
      %s57 = sshll.u32 [#allocation8], 4
      %s58 = int_to_ptr.vmem [resolvable:$true] %s57
      %63 = dma.hbm_to_vmem [thread:$0]  %s3, 256, %s58, [#allocation9], 64, 64, 4
    $region17: #{tpu_custom_call.1} parent=1 // pred_fallthru
      _
    // Predicated region
    $region18: #{tpu_custom_call.1} parent=1 // pred_check
      _
    $region19: #{tpu_custom_call.1} parent=1 // pred_check_branch
      %65 = sbr.rel (0) target = $region21
    $region20: #{tpu_custom_call.1} parent=1 // pred_region
      _
    $region21: #{tpu_custom_call.1} parent=1 // pred_fallthru
      _
    // Predicated region
    $region22: #{tpu_custom_call.1} parent=1 // pred_check
      _
    $region23: #{tpu_custom_call.1} parent=1 // pred_check_branch
      %67 = sbr.rel (0) target = $region25
    $region24: #{tpu_custom_call.1} parent=1 // pred_region
      %s69 = ssub.s32 256, 256
      %70 = vsyncadd [#allocation9], %s69
      %s71 = sshll.u32 [#allocation10], 4
      %s72 = int_to_ptr.vmem [resolvable:$true] %s71
      %77 = dma.hbm_to_vmem [thread:$0]  %s5, 256, %s72, [#allocation9], 64, 64, 4
    $region25: #{tpu_custom_call.1} parent=1 // pred_fallthru
      _
    // Predicated region
    $region26: #{tpu_custom_call.1} parent=1 // pred_check
      _
    $region27: #{tpu_custom_call.1} parent=1 // pred_check_branch
      %79 = sbr.rel (0) target = $region29
    $region28: #{tpu_custom_call.1} parent=1 // pred_region
      _
    $region29: #{tpu_custom_call.1} parent=1 // pred_fallthru
      _
    // Predicated region
    $region30: #{tpu_custom_call.1} parent=1 // pred_check
      _
    $region31: #{tpu_custom_call.1} parent=1 // pred_check_branch
      %81 = sbr.rel (0) target = $region33
    $region32: #{tpu_custom_call.1} parent=1 // pred_region
      %82 = dma.done [#allocation3], 128
    $region33: #{tpu_custom_call.1} parent=1 // pred_fallthru
      _
    // Predicated region
    $region34: #{tpu_custom_call.1} parent=1 // pred_check
      _
    $region35: #{tpu_custom_call.1} parent=1 // pred_check_branch
      %84 = sbr.rel (0) target = $region37
    $region36: #{tpu_custom_call.1} parent=1 // pred_region
      %85 = dma.done [#allocation6], 128
    $region37: #{tpu_custom_call.1} parent=1 // pred_fallthru
      _
    // Predicated region
    $region38: #{tpu_custom_call.1} parent=1 // pred_check
      _
    $region39: #{tpu_custom_call.1} parent=1 // pred_check_branch
      %87 = sbr.rel (0) target = $region41
    $region40: #{tpu_custom_call.1} parent=1 // pred_region
      %88 = dma.done [#allocation6], 256
    $region41: #{tpu_custom_call.1} parent=1 // pred_fallthru
      _
    // Predicated region
    $region42: #{tpu_custom_call.1} parent=1 // pred_check
      _
    $region43: #{tpu_custom_call.1} parent=1 // pred_check_branch
      %90 = sbr.rel (0) target = $region45
    $region44: #{tpu_custom_call.1} parent=1 // pred_region
      %91 = dma.done [#allocation9], 256
    $region45: #{tpu_custom_call.1} parent=1 // pred_fallthru
      _
    // Predicated region
    $region46: #{tpu_custom_call.1} parent=1 // pred_check
      _
    $region47: #{tpu_custom_call.1} parent=1 // pred_check_branch
      %93 = sbr.rel (0) target = $region49
    $region48: #{tpu_custom_call.1} parent=1 // pred_region
      %94 = dma.done [#allocation9], 256
    $region49: #{tpu_custom_call.1} parent=1 // pred_fallthru
      _
    %v96 = vld [vmem:[#allocation2] sm:$0xf]
    %v97 = vld [vmem:[#allocation2 + $0x4] sm:$0xf]
    %v98 = vld [vmem:[#allocation5] sm:$0xf]
    %v99 = vld [vmem:[#allocation5 + $0x4] sm:$0xf]
    %v100 = vld [vmem:[#allocation7] sm:$0xf]
    %v101 = vld [vmem:[#allocation7 + $0x4] sm:$0xf]
    %v102 = vld [vmem:[#allocation7 + $0x8] sm:$0xf]
    %v103 = vld [vmem:[#allocation7 + $0xc] sm:$0xf]
    %v104 = vld [vmem:[#allocation8] sm:$0xf]
    %v105 = vld [vmem:[#allocation8 + $0x4] sm:$0xf]
    %v106 = vld [vmem:[#allocation8 + $0x8] sm:$0xf]
    %v107 = vld [vmem:[#allocation8 + $0xc] sm:$0xf]
    %v110 = vunpack.c.l.b16 %v98
    %v111 = vunpack.c.l.b16 %v99
    %v112 = vpack.c.b16 %v111, %v110
    %v117 = vunpack.c.l.b16 %v104
    %v118 = vunpack.c.l.b16 %v105
    %v119 = vunpack.c.l.b16 %v106
    %v120 = vunpack.c.l.b16 %v107
    %v121 = vpack.c.b16 %v118, %v117
    %v122 = vpack.c.b16 %v120, %v119
    %vm125 = vcmask 261120
    %v127 = vsel %vm125, %v112, 0
    %129 = vmatprep.subr.bf16.mxu0 0
    %130 = vmatpush1.bf16.msra.mxu0 0
    %131 = vmatprep.subr.bf16.mxu0 0
    %132 = vmatpush1.bf16.msra.mxu0 0
    %133 = vmatprep.subr.bf16.mxu0 0
    %134 = vmatpush1.bf16.msra.mxu0 0
    %135 = vmatprep.subr.bf16.mxu0 0
    %136 = vmatpush1.bf16.msra.mxu0 0
    %137 = vmatprep.subr.bf16.mxu0 0
    %138 = vmatpush1.bf16.msra.mxu0 0
    %139 = vmatprep.subr.bf16.mxu0 0
    %140 = vmatpush1.bf16.msra.mxu0 0
    %141 = vmatprep.subr.bf16.mxu0 0
    %142 = vmatpush1.bf16.msra.mxu0 %v122
    %143 = vmatprep.subr.bf16.mxu0 0
    %144 = vmatpush1.bf16.msra.mxu0 %v121
    %145 = vmatprep.subr.bf16.mxu0 0
    %146 = vmatpush2.bf16.msra.mxu0 0
    %147 = vmatprep.subr.bf16.mxu0 0
    %148 = vmatpush2.bf16.msra.mxu0 0
    %149 = vmatprep.subr.bf16.mxu0 0
    %150 = vmatpush2.bf16.msra.mxu0 0
    %151 = vmatprep.subr.bf16.mxu0 0
    %152 = vmatpush2.bf16.msra.mxu0 0
    %153 = vmatprep.subr.bf16.mxu0 0
    %154 = vmatpush2.bf16.msra.mxu0 0
    %155 = vmatprep.subr.bf16.mxu0 0
    %156 = vmatpush2.bf16.msra.mxu0 0
    %157 = vmatprep.subr.bf16.mxu0 0
    %158 = vmatpush2.bf16.msra.mxu0 0
    %159 = vmatprep.subr.bf16.mxu0 0
    %160 = vmatpush2.bf16.msra.mxu0 0
    %161 = vmatprep.mubr.bf16.mxu0 0
    %162 = vmatmul.mubr.bf16.gmra.mxu0 %v127
    %v163 = vpop.f32.mrf.mxu0
    %v164 = vadd.f32 0.0, %v163
    %v165 = vpop.f32.mrf.mxu0
    %v166 = vpop.f32.mrf.mxu0
    %v167 = vadd.f32 0.0, %v166
    %v168 = vpop.f32.mrf.mxu0
    %169 = vdwg.mxu0
    %v172 = vunpack.c.l.b16 %v96
    %v173 = vunpack.c.l.b16 %v97
    %v174 = vpack.c.b16 %v173, %v172
    %v179 = vunpack.c.l.b16 %v100
    %v180 = vunpack.c.l.b16 %v101
    %v181 = vunpack.c.l.b16 %v102
    %v182 = vunpack.c.l.b16 %v103
    %v183 = vpack.c.b16 %v180, %v179
    %v184 = vpack.c.b16 %v182, %v181
    %v188 = vsel %vm125, %v174, 0
    %190 = vmatprep.subr.bf16.mxu0 0
    %191 = vmatpush1.bf16.msra.mxu0 0
    %192 = vmatprep.subr.bf16.mxu0 0
    %193 = vmatpush1.bf16.msra.mxu0 0
    %194 = vmatprep.subr.bf16.mxu0 0
    %195 = vmatpush1.bf16.msra.mxu0 0
    %196 = vmatprep.subr.bf16.mxu0 0
    %197 = vmatpush1.bf16.msra.mxu0 0
    %198 = vmatprep.subr.bf16.mxu0 0
    %199 = vmatpush1.bf16.msra.mxu0 0
    %200 = vmatprep.subr.bf16.mxu0 0
    %201 = vmatpush1.bf16.msra.mxu0 0
    %202 = vmatprep.subr.bf16.mxu0 0
    %203 = vmatpush1.bf16.msra.mxu0 %v184
    %204 = vmatprep.subr.bf16.mxu0 0
    %205 = vmatpush1.bf16.msra.mxu0 %v183
    %206 = vmatprep.subr.bf16.mxu0 0
    %207 = vmatpush2.bf16.msra.mxu0 0
    %208 = vmatprep.subr.bf16.mxu0 0
    %209 = vmatpush2.bf16.msra.mxu0 0
    %210 = vmatprep.subr.bf16.mxu0 0
    %211 = vmatpush2.bf16.msra.mxu0 0
    %212 = vmatprep.subr.bf16.mxu0 0
    %213 = vmatpush2.bf16.msra.mxu0 0
    %214 = vmatprep.subr.bf16.mxu0 0
    %215 = vmatpush2.bf16.msra.mxu0 0
    %216 = vmatprep.subr.bf16.mxu0 0
    %217 = vmatpush2.bf16.msra.mxu0 0
    %218 = vmatprep.subr.bf16.mxu0 0
    %219 = vmatpush2.bf16.msra.mxu0 0
    %220 = vmatprep.subr.bf16.mxu0 0
    %221 = vmatpush2.bf16.msra.mxu0 0
    %222 = vmatprep.mubr.bf16.mxu0 0
    %223 = vmatmul.mubr.bf16.gmra.mxu0 %v188
    %v224 = vpop.f32.mrf.mxu0
    %v225 = vadd.f32 %v164, %v224
    %v226 = vpop.f32.mrf.mxu0
    %v227 = vpop.f32.mrf.mxu0
    %v228 = vadd.f32 %v167, %v227
    %v229 = vpop.f32.mrf.mxu0
    %230 = vdwg.mxu0
    %v231 = vld [vmem:[%s4] sm:$0x1]
    %v233 = vlaneseq
    %v234 = vshrl.u32 %v233, 7
    %v235 = vsub.s32 0, %v234
    %v236 = vrot.slane %v231, %v235
    %v238 = vadd.f32 %v225, %v236
    %v239 = vadd.f32 %v228, %v236
    %v240 = vsub.f32 0.0, %v238
    %v241 = vsub.f32 0.0, %v239
    %v242 = vmul.f32 %v240, 1.442695
    %v243 = vpow.pop %v242
    %v244 = vmul.f32 %v241, 1.442695
    %v245 = vpow.pop %v244
    %v246 = vadd.f32 %v243, 1.0
    %v247 = vadd.f32 %v245, 1.0
    %v248 = vrcp.pop %v246
    %v249 = vrcp.pop %v247
    %v250 = vunpack.c.l.bf16 %v96
    %v251 = vunpack.c.l.bf16 %v97
    %v252 = vunpack.c.l.bf16 %v98
    %v253 = vunpack.c.l.bf16 %v99
    %v254 = vsub.f32 %v252, %v250
    %v255 = vsub.f32 %v253, %v251
    %v256 = vmul.f32 %v248, %v254
    %v257 = vmul.f32 %v249, %v255
    %v258 = vadd.f32 %v250, %v256
    %v259 = vadd.f32 %v251, %v257
    %v260 = vpack.c.bf16 %v259, %v258
    %v261 = vld [vmem:[#allocation10] sm:$0xf]
    %v262 = vld [vmem:[#allocation10 + $0x4] sm:$0xf]
    %v263 = vld [vmem:[#allocation10 + $0x8] sm:$0xf]
    %v264 = vld [vmem:[#allocation10 + $0xc] sm:$0xf]
    %v265 = vld [vmem:[%s6] sm:$0x1]
    %v267 = vlaneseq
    %v268 = vshrl.u32 %v267, 7
    %v269 = vsub.s32 0, %v268
    %v270 = vrot.slane %v265, %v269
    %v276 = vunpack.c.l.b16 %v261
    %v277 = vunpack.c.l.b16 %v262
    %v278 = vunpack.c.l.b16 %v263
    %v279 = vunpack.c.l.b16 %v264
    %v280 = vpack.c.b16 %v277, %v276
    %v281 = vpack.c.b16 %v279, %v278
    %v285 = vsel %vm125, %v260, 0
    %287 = vmatprep.subr.bf16.mxu0 0
    %288 = vmatpush1.bf16.msra.mxu0 0
    %289 = vmatprep.subr.bf16.mxu0 0
    %290 = vmatpush1.bf16.msra.mxu0 0
    %291 = vmatprep.subr.bf16.mxu0 0
    %292 = vmatpush1.bf16.msra.mxu0 0
    %293 = vmatprep.subr.bf16.mxu0 0
    %294 = vmatpush1.bf16.msra.mxu0 0
    %295 = vmatprep.subr.bf16.mxu0 0
    %296 = vmatpush1.bf16.msra.mxu0 0
    %297 = vmatprep.subr.bf16.mxu0 0
    %298 = vmatpush1.bf16.msra.mxu0 0
    %299 = vmatprep.subr.bf16.mxu0 0
    %300 = vmatpush1.bf16.msra.mxu0 %v281
    %301 = vmatprep.subr.bf16.mxu0 0
    %302 = vmatpush1.bf16.msra.mxu0 %v280
    %303 = vmatprep.subr.bf16.mxu0 0
    %304 = vmatpush2.bf16.msra.mxu0 0
    %305 = vmatprep.subr.bf16.mxu0 0
    %306 = vmatpush2.bf16.msra.mxu0 0
    %307 = vmatprep.subr.bf16.mxu0 0
    %308 = vmatpush2.bf16.msra.mxu0 0
    %309 = vmatprep.subr.bf16.mxu0 0
    %310 = vmatpush2.bf16.msra.mxu0 0
    %311 = vmatprep.subr.bf16.mxu0 0
    %312 = vmatpush2.bf16.msra.mxu0 0
    %313 = vmatprep.subr.bf16.mxu0 0
    %314 = vmatpush2.bf16.msra.mxu0 0
    %315 = vmatprep.subr.bf16.mxu0 0
    %316 = vmatpush2.bf16.msra.mxu0 0
    %317 = vmatprep.subr.bf16.mxu0 0
    %318 = vmatpush2.bf16.msra.mxu0 0
    %319 = vmatprep.mubr.bf16.mxu0 0
    %320 = vmatmul.mubr.bf16.gmra.mxu0 %v285
    %v321 = vpop.f32.mrf.mxu0
    %v322 = vadd.f32 %v270, %v321
    %v323 = vpop.f32.mrf.mxu0
    %v324 = vpop.f32.mrf.mxu0
    %v325 = vadd.f32 %v270, %v324
    %v326 = vpop.f32.mrf.mxu0
    %327 = vdwg.mxu0
    %328 = vst [vmem:[#allocation11] sm:$0xff] %v322
    %329 = vst [vmem:[#allocation11 + $0x8] sm:$0xff] %v325
    // Predicated region
    $region50: #{tpu_custom_call.1} parent=1 // pred_check
      _
    $region51: #{tpu_custom_call.1} parent=1 // pred_check_branch
      %331 = sbr.rel (0) target = $region53
    $region52: #{tpu_custom_call.1} parent=1 // pred_region
      %s333 = ssub.s32 256, 256
      %334 = vsyncadd [#allocation4], %s333
      %s335 = sshll.u32 [#allocation11], 4
      %s336 = int_to_ptr.vmem [resolvable:$true] %s335
      %341 = dma.vmem_to_hbm [thread:$0]  %s336, 256, %s7, [#allocation4], 128, 128, 8
    $region53: #{tpu_custom_call.1} parent=1 // pred_fallthru
      _
    // Predicated region
    $region54: #{tpu_custom_call.1} parent=1 // pred_check
      _
    $region55: #{tpu_custom_call.1} parent=1 // pred_check_branch
      %343 = sbr.rel (0) target = $region57
    $region56: #{tpu_custom_call.1} parent=1 // pred_region
      %344 = dma.done [#allocation4], 256
    $region57: #{tpu_custom_call.1} parent=1 // pred_fallthru
      _
    %345 = vsyncpa [#allocation3], 1
    %346 = vsyncpa [#allocation6], 1
    %347 = vsyncpa [#allocation9], 1
    %348 = vsyncpa [#allocation4], 1

</llo_original>
